<compile_context>
chip_gen: v6e
topology: v6e:2x2x1
jax: 0.10.0
libtpu: 0.0.40
codegen_flags: <defaults>
</compile_context>

<pallas_src>
import functools

import jax
import jax.numpy as jnp
from jax import lax
from jax.experimental import pallas as pl
from jax.experimental.pallas import tpu as pltpu

BN_EPS = 1e-5
NORM_EPS = 1e-12
VMEM_LIMIT = 32 * 1024 * 1024   # scoped cap; per-step footprint stays well below this
                                # (fine for v5e/v6e/v7x per-TC budgets)


def _round_up(x, m):
    return (x + m - 1) // m * m


def _tiles_for(n):
    """(tm, tk): row tile and contraction tile for the aggregation pass."""
    if n <= 512:
        tm = _round_up(max(n, 1), 128)
        return tm, tm
    # Large graphs: big row tiles cut pipeline overhead and Z re-streaming;
    # tm multiple of 8, tk multiple of 16 (bf16 sublanes) and of 128 (lanes).
    return 1024, 512


def prepare_adjacency(adj, n_pad):
    """Zero-pad to (n_pad, n_pad) and cast to bf16 (exact for {0,1} entries).

    The adjacency is static per graph -- call this ONCE and reuse the result
    across forward calls instead of re-padding/re-casting every call.
    """
    n = adj.shape[0]
    out = jnp.zeros((n_pad, n_pad), jnp.bfloat16)
    return out.at[:n, :n].set(adj.astype(jnp.bfloat16))


# --------------------------------------------------------------------------- pass 0
def _xw_kernel(x_ref, w_ref, z_ref):
    # Z = X @ W  (bias is added after aggregation, matching DGL GraphConv).
    z_ref[...] = jnp.dot(x_ref[...], w_ref[...],
                         preferred_element_type=jnp.float32).astype(z_ref.dtype)


# --------------------------------------------------------------------------- pass 1
def _aggregate_kernel(n_valid, tm, ab_ref, adj_ref, z_ref, bias_ref,
                      h_ref, stats_ref):
    """H = A @ Z + b ; PReLU(a1) ; per-row-tile partial BN stats.

    Accumulates directly into the resident f32 output block h_ref (its index map
    ignores the reduction axis), so no scratch accumulator / extra copy is needed.
    NOTE: all pl.program_id / pl.num_programs calls stay at kernel top level --
    they must not appear inside pl.when bodies (no interpret/CPU lowering rule).
    """
    i = pl.program_id(0)
    k = pl.program_id(1)
    nk = pl.num_programs(1)
    row0 = i * tm

    @pl.when(k == 0)
    def _():
        h_ref[...] = jnp.zeros_like(h_ref)

    # Adjacency is {0,1} in bf16 (exact); Z is bf16 by default -> native bf16 MXU.
    # (astype is a no-op for the default bf16 path; upcasts adj for the exact path.)
    h_ref[...] += jnp.dot(adj_ref[...].astype(z_ref.dtype), z_ref[...],
                          preferred_element_type=jnp.float32)

    @pl.when(k == nk - 1)
    def _():
        h = h_ref[...] + bias_ref[...]
        a1 = ab_ref[0]
        h = jnp.where(h >= 0.0, h, a1 * h)
        h_ref[...] = h

        # Partial BatchNorm statistics; padded rows must not contaminate them.
        rows = row0 + lax.broadcasted_iota(jnp.int32, (tm, 1), 0)
        hm = jnp.where(rows < n_valid, h, 0.0)
        s = jnp.sum(hm, axis=0, keepdims=True)          # (1, Dp)
        ss = jnp.sum(hm * hm, axis=0, keepdims=True)    # (1, Dp)
        stats_ref[...] = jnp.concatenate([s, ss], axis=0)   # (2, Dp)


# --------------------------------------------------------------------------- pass 2
def _finalize_kernel(ab_ref, h_ref, scale_ref, shift_ref, o_ref):
    """BN (folded scale/shift) ; PReLU(a2) ; row L2 normalize (rsqrt on EUP)."""
    h = h_ref[...] * scale_ref[...] + shift_ref[...]
    a2 = ab_ref[1]
    h = jnp.where(h >= 0.0, h, a2 * h)
    ss = jnp.sum(h * h, axis=-1, keepdims=True)
    inv = lax.rsqrt(jnp.maximum(ss, NORM_EPS * NORM_EPS))   # = 1/max(||h||, eps)
    o_ref[...] = (h * inv).astype(o_ref.dtype)


# ------------------------------------------------------------------------- wrapper
def decoder2_forward(feat, adj, params, *, z_dtype=jnp.bfloat16):
    """Forward pass.  `adj` may be the raw (N, N) adjacency or a pre-prepared
    (n_pad, n_pad) bf16 adjacency from prepare_adjacency (preferred: prep once)."""
    # TODO(synk): training-mode dropout (random mask + 1/(1-p) scale) not emitted;
    # eval-mode identity is used for a deterministic forward.
    # TODO(synk): real PubMed adjacency is sparse (~4.5 nnz/row); a CSR
    # scalar-prefetch gather kernel would beat this dense A@Z structurally.
    N, Din = feat.shape
    Dout = params["w"].shape[1]
    f32 = jnp.float32

    tm, tk = _tiles_for(N)
    n_pad = _round_up(N, tm)
    din_p = _round_up(Din, 128)
    dout_p = _round_up(Dout, 128)
    n_row = n_pad // tm
    n_k = n_pad // tk

    # Adjacency: use the pre-staged padded bf16 version if supplied (hoisted prep).
    if adj.shape == (n_pad, n_pad):
        adj_p = adj if adj.dtype == jnp.bfloat16 else adj.astype(jnp.bfloat16)
    elif adj.shape == (N, N):
        adj_p = prepare_adjacency(adj, n_pad)
    else:
        raise ValueError(f"adjacency shape {adj.shape} incompatible with N={N}")

    # Zero-padded operands (padding is exactly neutral through every stage).
    x_p = jnp.zeros((n_pad, din_p), f32).at[:N, :Din].set(feat.astype(f32))
    w_p = jnp.zeros((din_p, dout_p), f32).at[:Din, :Dout].set(params["w"])
    b_p = jnp.zeros((1, dout_p), f32).at[:, :Dout].set(params["b"])
    gamma_p = jnp.zeros((1, dout_p), f32).at[:, :Dout].set(params["gamma"])
    beta_p = jnp.zeros((1, dout_p), f32).at[:, :Dout].set(params["beta"])
    # PReLU scalars packed into one small 1-D SMEM array (a1, a2).
    ab = jnp.concatenate([params["a1"].reshape(-1), params["a2"].reshape(-1)])

    cparams_row = pltpu.CompilerParams(
        dimension_semantics=("parallel",), vmem_limit_bytes=VMEM_LIMIT)

    # ---- pass 0: Z = X @ W --------------------------------------------------
    z = pl.pallas_call(
        _xw_kernel,
        out_shape=jax.ShapeDtypeStruct((n_pad, dout_p), z_dtype),
        grid=(n_row,),
        in_specs=[
            pl.BlockSpec((tm, din_p), lambda i: (i, 0)),
            pl.BlockSpec((din_p, dout_p), lambda i: (0, 0)),
        ],
        out_specs=pl.BlockSpec((tm, dout_p), lambda i: (i, 0)),
        compiler_params=cparams_row,
    )(x_p, w_p)

    # ---- pass 1: H = A @ Z + b, PReLU(a1), partial BN stats -------------------
    z_bytes = jnp.dtype(z_dtype).itemsize
    flops = int(2 * n_pad * n_pad * dout_p)
    bytes_accessed = int(n_pad * n_pad * 2                    # adj (bf16)
                         + n_row * n_pad * dout_p * z_bytes   # Z re-read per row tile
                         + n_pad * dout_p * 4                 # H write
                         + n_row * 2 * dout_p * 4)            # stats write
    h, stats = pl.pallas_call(
        functools.partial(_aggregate_kernel, N, tm),
        out_shape=(jax.ShapeDtypeStruct((n_pad, dout_p), f32),
                   jax.ShapeDtypeStruct((n_row, 2, dout_p), f32)),
        grid=(n_row, n_k),
        in_specs=[
            pl.BlockSpec(memory_space=pltpu.SMEM),                 # (a1, a2)
            pl.BlockSpec((tm, tk), lambda i, k: (i, k)),           # adj tile (bf16)
            pl.BlockSpec((tk, dout_p), lambda i, k: (k, 0)),       # Z tile
            pl.BlockSpec((1, dout_p), lambda i, k: (0, 0)),        # bias
        ],
        out_specs=(
            pl.BlockSpec((tm, dout_p), lambda i, k: (i, 0)),       # H (resident acc)
            pl.BlockSpec((None, 2, dout_p), lambda i, k: (i, 0, 0)),  # partial stats
        ),
        compiler_params=pltpu.CompilerParams(
            dimension_semantics=("parallel", "arbitrary"),
            vmem_limit_bytes=VMEM_LIMIT),
        cost_estimate=pl.CostEstimate(flops=flops, transcendentals=0,
                                      bytes_accessed=bytes_accessed),
    )(ab, adj_p, z, b_p)

    # ---- global BN stats -> folded scale/shift (tiny cross-tile reduction) ----
    # TODO(synk): E[x^2]-mean^2 in f32 can lose precision for very large graphs
    # with degree-sum aggregation; switch to centered/two-pass stats if needed.
    tot = jnp.sum(stats, axis=0)                      # (2, dout_p)
    mean = tot[0] / N
    var = jnp.maximum(tot[1] / N - mean * mean, 0.0)  # biased variance
    scale = gamma_p * lax.rsqrt(var + BN_EPS)         # (1, dout_p)
    shift = beta_p - mean * scale                     # (1, dout_p)

    # ---- pass 2: BN apply + PReLU(a2) + row L2 normalize ----------------------
    out_p = pl.pallas_call(
        _finalize_kernel,
        out_shape=jax.ShapeDtypeStruct((n_pad, dout_p), f32),
        grid=(n_row,),
        in_specs=[
            pl.BlockSpec(memory_space=pltpu.SMEM),               # (a1, a2)
            pl.BlockSpec((tm, dout_p), lambda i: (i, 0)),        # H tile
            pl.BlockSpec((1, dout_p), lambda i: (0, 0)),         # scale
            pl.BlockSpec((1, dout_p), lambda i: (0, 0)),         # shift
        ],
        out_specs=pl.BlockSpec((tm, dout_p), lambda i: (i, 0)),
        compiler_params=cparams_row,
    )(ab, h, scale, shift)

    return out_p[:N, :Dout]


# ---------------------------------------------------------------------- reference
def decoder2_reference(feat, adj, params):
    """Pure-JAX f32 reference mirroring the PyTorch forward."""
    x = feat.astype(jnp.float32)
    h = adj.astype(jnp.float32) @ (x @ params["w"]) + params["b"]
    a1 = params["a1"][0, 0]
    h = jnp.where(h >= 0.0, h, a1 * h)
    mean = jnp.mean(h, axis=0, keepdims=True)
    var = jnp.mean((h - mean) ** 2, axis=0, keepdims=True)
    h = params["gamma"] * (h - mean) / jnp.sqrt(var + BN_EPS) + params["beta"]
    a2 = params["a2"][0, 0]
    h = jnp.where(h >= 0.0, h, a2 * h)
    norm = jnp.sqrt(jnp.sum(h * h, axis=-1, keepdims=True))
    return h / jnp.maximum(norm, NORM_EPS)


def init_params(key, in_hidden, out_hidden):
    (kw,) = jax.random.split(key, 1)
    # Xavier-uniform like DGL GraphConv reset_parameters; bias zeros.
    limit = (6.0 / (in_hidden + out_hidden)) ** 0.5
    w = jax.random.uniform(kw, (in_hidden, out_hidden), jnp.float32, -limit, limit)
    return {
        "w": w,
        "b": jnp.zeros((1, out_hidden), jnp.float32),
        "a1": jnp.full((1, 1), 0.25, jnp.float32),      # nn.PReLU() default
        "gamma": jnp.ones((1, out_hidden), jnp.float32),
        "beta": jnp.zeros((1, out_hidden), jnp.float32),
        "a2": jnp.full((1, 1), 0.25, jnp.float32),      # nn.PReLU() default
    }


if __name__ == "__main__":
    N, IN_HIDDEN, OUT_HIDDEN = 16, 32, 32

    key = jax.random.PRNGKey(0)
    k_feat, k_adj, k_par = jax.random.split(key, 3)

    feat = jax.random.normal(k_feat, (N, IN_HIDDEN), jnp.float32)
    # Dense random graph adjacency (sum-aggregation message passing).
    adj = jax.random.bernoulli(k_adj, 0.3, (N, N)).astype(jnp.float32)
    params = init_params(k_par, IN_HIDDEN, OUT_HIDDEN)

    # Adjacency pad + bf16 cast hoisted out of the per-call path (once per graph).
    tm, _ = _tiles_for(N)
    adj_prep = prepare_adjacency(adj, _round_up(N, tm))

    ref = decoder2_reference(feat, adj, params)

    # Exact path (f32 Z stream) -- matches the f32 reference to tight tolerance.
    out_exact = decoder2_forward(feat, adj_prep, params, z_dtype=jnp.float32)
    out_exact = jax.block_until_ready(out_exact)
    assert out_exact.shape == (N, OUT_HIDDEN)
    assert jnp.allclose(out_exact, ref, atol=1e-5, rtol=1e-5), \
        "exact-path kernel vs reference mismatch"

    # Default fast path (bf16 Z on the MXU) -- tolerance reflects bf16 rounding of Z.
    out = decoder2_forward(feat, adj_prep, params)
    out = jax.block_until_ready(out)
    assert out.shape == (N, OUT_HIDDEN)
    assert jnp.allclose(out, ref, atol=2e-2, rtol=2e-2), \
        "bf16-path kernel vs reference mismatch"

    print("KERNEL_OK")
</pallas_src>

<mosaic_0001>
module attributes {stable_mosaic.version = 11 : i64} {
  func.func @_xw_kernel(%arg0: i32, %arg1: memref<128x128xf32, #tpu.memory_space<vmem>>, %arg2: memref<128x128xf32, #tpu.memory_space<vmem>>, %arg3: memref<128x128xf32, #tpu.memory_space<vmem>>) attributes {dimension_semantics = [#tpu.dimension_semantics<parallel>], iteration_bounds = array<i64: 1>, scalar_prefetch = 0 : i64, scratch_operands = 0 : i64, tpu.core_type = #tpu.core_type<tc>, window_params = [{transform_indices = @transform_0, window_bounds = array<i64: 128, 128>}, {pipeline_mode = #tpu.pipeline_mode<synchronous>, transform_indices = @transform_1, window_bounds = array<i64: 128, 128>}, {transform_indices = @transform_2, window_bounds = array<i64: 128, 128>}]} {
    %c0 = arith.constant 0 : index
    %c0_0 = arith.constant 0 : index
    %0 = vector.load %arg1[%c0, %c0_0] : memref<128x128xf32, #tpu.memory_space<vmem>>, vector<128x128xf32>
    %c0_1 = arith.constant 0 : index
    %c0_2 = arith.constant 0 : index
    %1 = vector.load %arg2[%c0_1, %c0_2] : memref<128x128xf32, #tpu.memory_space<vmem>>, vector<128x128xf32>
    %cst = arith.constant dense<0.000000e+00> : vector<128x128xf32>
    %2 = tpu.matmul %0, %1, %cst {dimension_numbers = #tpu.dot_dimension_numbers<[1], [0], [0], [1], [0, 0, 1, 1], [], []>} : vector<128x128xf32>, vector<128x128xf32>, vector<128x128xf32> -> vector<128x128xf32>
    %c0_3 = arith.constant 0 : index
    %c0_4 = arith.constant 0 : index
    %3 = vector.load %arg3[%c0_3, %c0_4] : memref<128x128xf32, #tpu.memory_space<vmem>>, vector<128x128xf32>
    tpu.vector_store %arg3[%c0_3, %c0_4], %2 {strides = array<i32>} : memref<128x128xf32, #tpu.memory_space<vmem>>, vector<128x128xf32>,
    return
  }
  func.func @transform_0(%arg0: i32) -> (i32, i32) {
    %c0_i32 = arith.constant 0 : i32
    %c0_i32_0 = arith.constant 0 : i32
    return %arg0, %c0_i32 : i32, i32
  }
  func.func @transform_1(%arg0: i32) -> (i32, i32) {
    %c0_i32 = arith.constant 0 : i32
    %c0_i32_0 = arith.constant 0 : i32
    %c0_i32_1 = arith.constant 0 : i32
    return %c0_i32, %c0_i32_0 : i32, i32
  }
  func.func @transform_2(%arg0: i32) -> (i32, i32) {
    %c0_i32 = arith.constant 0 : i32
    %c0_i32_0 = arith.constant 0 : i32
    return %arg0, %c0_i32 : i32, i32
  }
}

</mosaic_0001>

<llo_original>
// kernel: tpu_custom_call.1
$region0: #{tpu_custom_call.1}
  #allocation0 [shape = 'u32[]', space=smem, size = 0x4, offset = 0x4, fixed_abs, tag = 'smem constant byte address 0x4 - core index']
  #allocation1 [shape = 'u32[144,128]{1,0:T(1,128)}', space=vmem, size = 0x12000, scoped, tag = 'internal scratch']
  %s0 = inlined_call_operand.hbm [shape: f32[128,128], index: 0, kind: input, shape index: {}]
  %s1 = inlined_call_operand.hbm [shape: f32[128,128], index: 1, kind: input, shape index: {}]
  %s2 = inlined_call_operand.hbm [shape: f32[128,128], index: 2, kind: output, shape index: {}]
  %s3 = sld [smem:[#allocation0]]
  $region26: #{tpu_custom_call.1} parent=0
    _
  %s5 = ssub.s32 1, %s3
  %s6 = scalar_select 0, %s5, %s3
  $region1: #{tpu_custom_call.1} parent=0
    #allocation2 [shape = 'u8[65536]{0}', space=vmem, size = 0x10000, scoped, tag = 'input window, operand 0, single buffered']
    #allocation3 [shape = 's32[1]{0}', space=sflag, size = 0x4, scoped, tag = 'scoped memory for tpu_custom_call.1']
    #allocation4 [shape = 's32[1]{0}', space=sflag, size = 0x4, scoped, tag = 'scoped memory for tpu_custom_call.1']
    #allocation5 [shape = 'u8[65536]{0}', space=vmem, size = 0x10000, scoped, tag = 'input window, operand 1, single buffered']
    #allocation6 [shape = 's32[1]{0}', space=sflag, size = 0x4, scoped, tag = 'scoped memory for tpu_custom_call.1']
    #allocation7 [shape = 'u8[65536]{0}', space=vmem, size = 0x10000, scoped, tag = 'output window, operand 0, single buffered']
    %7 = vsyncpa [#allocation3], 0
    %8 = vsyncpa [#allocation6], 0
    %9 = vsyncpa [#allocation4], 0
    // Predicated region
    $region2: #{tpu_custom_call.1} parent=1 // pred_check
      _
    $region3: #{tpu_custom_call.1} parent=1 // pred_check_branch
      %11 = sbr.rel (0) target = $region5
    $region4: #{tpu_custom_call.1} parent=1 // pred_region
      %s13 = ssub.s32 2048, 2048
      %14 = vsyncadd [#allocation3], %s13
      %s15 = sshll.u32 [#allocation2], 4
      %s16 = int_to_ptr.vmem [resolvable:$true] %s15
      %21 = dma.hbm_to_vmem [thread:$0]  %s0, 2048, %s16, [#allocation3], 128, 128, 8
    $region5: #{tpu_custom_call.1} parent=1 // pred_fallthru
      _
    // Predicated region
    $region6: #{tpu_custom_call.1} parent=1 // pred_check
      _
    $region7: #{tpu_custom_call.1} parent=1 // pred_check_branch
      %23 = sbr.rel (0) target = $region9
    $region8: #{tpu_custom_call.1} parent=1 // pred_region
      %s25 = ssub.s32 2048, 2048
      %26 = vsyncadd [#allocation6], %s25
      %s27 = sshll.u32 [#allocation5], 4
      %s28 = int_to_ptr.vmem [resolvable:$true] %s27
      %33 = dma.hbm_to_vmem [thread:$0]  %s1, 2048, %s28, [#allocation6], 128, 128, 8
    $region9: #{tpu_custom_call.1} parent=1 // pred_fallthru
      _
    // Predicated region
    $region10: #{tpu_custom_call.1} parent=1 // pred_check
      _
    $region11: #{tpu_custom_call.1} parent=1 // pred_check_branch
      %35 = sbr.rel (0) target = $region13
    $region12: #{tpu_custom_call.1} parent=1 // pred_region
      %36 = dma.done [#allocation3], 2048
    $region13: #{tpu_custom_call.1} parent=1 // pred_fallthru
      _
    // Predicated region
    $region14: #{tpu_custom_call.1} parent=1 // pred_check
      _
    $region15: #{tpu_custom_call.1} parent=1 // pred_check_branch
      %38 = sbr.rel (0) target = $region17
    $region16: #{tpu_custom_call.1} parent=1 // pred_region
      %39 = dma.done [#allocation6], 2048
    $region17: #{tpu_custom_call.1} parent=1 // pred_fallthru
      _
    %v40 = vld [vmem:[#allocation2] sm:$0xff]
    %v41 = vld [vmem:[#allocation2 + $0x8] sm:$0xff]
    %v42 = vld [vmem:[#allocation2 + $0x10] sm:$0xff]
    %v43 = vld [vmem:[#allocation2 + $0x18] sm:$0xff]
    %v44 = vld [vmem:[#allocation2 + $0x20] sm:$0xff]
    %v45 = vld [vmem:[#allocation2 + $0x28] sm:$0xff]
    %v46 = vld [vmem:[#allocation2 + $0x30] sm:$0xff]
    %v47 = vld [vmem:[#allocation2 + $0x38] sm:$0xff]
    %v48 = vld [vmem:[#allocation2 + $0x40] sm:$0xff]
    %v49 = vld [vmem:[#allocation2 + $0x48] sm:$0xff]
    %v50 = vld [vmem:[#allocation2 + $0x50] sm:$0xff]
    %v51 = vld [vmem:[#allocation2 + $0x58] sm:$0xff]
    %v52 = vld [vmem:[#allocation2 + $0x60] sm:$0xff]
    %v53 = vld [vmem:[#allocation2 + $0x68] sm:$0xff]
    %v54 = vld [vmem:[#allocation2 + $0x70] sm:$0xff]
    %v55 = vld [vmem:[#allocation2 + $0x78] sm:$0xff]
    %v56 = vld [vmem:[#allocation5] sm:$0xff]
    %v57 = vld [vmem:[#allocation5 + $0x8] sm:$0xff]
    %v58 = vld [vmem:[#allocation5 + $0x10] sm:$0xff]
    %v59 = vld [vmem:[#allocation5 + $0x18] sm:$0xff]
    %v60 = vld [vmem:[#allocation5 + $0x20] sm:$0xff]
    %v61 = vld [vmem:[#allocation5 + $0x28] sm:$0xff]
    %v62 = vld [vmem:[#allocation5 + $0x30] sm:$0xff]
    %v63 = vld [vmem:[#allocation5 + $0x38] sm:$0xff]
    %v64 = vld [vmem:[#allocation5 + $0x40] sm:$0xff]
    %v65 = vld [vmem:[#allocation5 + $0x48] sm:$0xff]
    %v66 = vld [vmem:[#allocation5 + $0x50] sm:$0xff]
    %v67 = vld [vmem:[#allocation5 + $0x58] sm:$0xff]
    %v68 = vld [vmem:[#allocation5 + $0x60] sm:$0xff]
    %v69 = vld [vmem:[#allocation5 + $0x68] sm:$0xff]
    %v70 = vld [vmem:[#allocation5 + $0x70] sm:$0xff]
    %v71 = vld [vmem:[#allocation5 + $0x78] sm:$0xff]
    %72 = vmatprep.subr.mxu0 0.0
    %73 = vmatpush1.msra.mxu0 %v71
    %74 = vmatprep.subr.mxu0 0.0
    %75 = vmatpush1.msra.mxu0 %v70
    %76 = vmatprep.subr.mxu0 0.0
    %77 = vmatpush1.msra.mxu0 %v69
    %78 = vmatprep.subr.mxu0 0.0
    %79 = vmatpush1.msra.mxu0 %v68
    %80 = vmatprep.subr.mxu0 0.0
    %81 = vmatpush1.msra.mxu0 %v67
    %82 = vmatprep.subr.mxu0 0.0
    %83 = vmatpush1.msra.mxu0 %v66
    %84 = vmatprep.subr.mxu0 0.0
    %85 = vmatpush1.msra.mxu0 %v65
    %86 = vmatprep.subr.mxu0 0.0
    %87 = vmatpush1.msra.mxu0 %v64
    %88 = vmatprep.subr.mxu0 0.0
    %89 = vmatpush1.msra.mxu0 %v63
    %90 = vmatprep.subr.mxu0 0.0
    %91 = vmatpush1.msra.mxu0 %v62
    %92 = vmatprep.subr.mxu0 0.0
    %93 = vmatpush1.msra.mxu0 %v61
    %94 = vmatprep.subr.mxu0 0.0
    %95 = vmatpush1.msra.mxu0 %v60
    %96 = vmatprep.subr.mxu0 0.0
    %97 = vmatpush1.msra.mxu0 %v59
    %98 = vmatprep.subr.mxu0 0.0
    %99 = vmatpush1.msra.mxu0 %v58
    %100 = vmatprep.subr.mxu0 0.0
    %101 = vmatpush1.msra.mxu0 %v57
    %102 = vmatprep.subr.mxu0 0.0
    %103 = vmatpush1.msra.mxu0 %v56
    %104 = vmatprep.subr.mxu0 0.0
    %105 = vmatpush2.msra.mxu0 0.0
    %106 = vmatprep.subr.mxu0 0.0
    %107 = vmatpush2.msra.mxu0 0.0
    %108 = vmatprep.subr.mxu0 0.0
    %109 = vmatpush2.msra.mxu0 0.0
    %110 = vmatprep.subr.mxu0 0.0
    %111 = vmatpush2.msra.mxu0 0.0
    %112 = vmatprep.subr.mxu0 0.0
    %113 = vmatpush2.msra.mxu0 0.0
    %114 = vmatprep.subr.mxu0 0.0
    %115 = vmatpush2.msra.mxu0 0.0
    %116 = vmatprep.subr.mxu0 0.0
    %117 = vmatpush2.msra.mxu0 0.0
    %118 = vmatprep.subr.mxu0 0.0
    %119 = vmatpush2.msra.mxu0 0.0
    %120 = vmatprep.subr.mxu0 0.0
    %121 = vmatpush2.msra.mxu0 0.0
    %122 = vmatprep.subr.mxu0 0.0
    %123 = vmatpush2.msra.mxu0 0.0
    %124 = vmatprep.subr.mxu0 0.0
    %125 = vmatpush2.msra.mxu0 0.0
    %126 = vmatprep.subr.mxu0 0.0
    %127 = vmatpush2.msra.mxu0 0.0
    %128 = vmatprep.subr.mxu0 0.0
    %129 = vmatpush2.msra.mxu0 0.0
    %130 = vmatprep.subr.mxu0 0.0
    %131 = vmatpush2.msra.mxu0 0.0
    %132 = vmatprep.subr.mxu0 0.0
    %133 = vmatpush2.msra.mxu0 0.0
    %134 = vmatprep.subr.mxu0 0.0
    %135 = vmatpush2.msra.mxu0 0.0
    %136 = vmatprep.mubr.f32.mxu0 0.0
    %137 = vmatmul.mubr.f32.gmra.mxu0 %v40
    %v138 = vpop.f32.mrf.mxu0
    %v139 = vadd.f32 0.0, %v138
    %v140 = vpop.f32.mrf.mxu0
    %141 = vmatprep.mubr.f32.mxu0 0.0
    %142 = vmatmul.mubr.f32.gmra.mxu0 %v41
    %v143 = vpop.f32.mrf.mxu0
    %v144 = vadd.f32 0.0, %v143
    %v145 = vpop.f32.mrf.mxu0
    %146 = vmatprep.mubr.f32.mxu0 0.0
    %147 = vmatmul.mubr.f32.gmra.mxu0 %v42
    %v148 = vpop.f32.mrf.mxu0
    %v149 = vadd.f32 0.0, %v148
    %v150 = vpop.f32.mrf.mxu0
    %151 = vmatprep.mubr.f32.mxu0 0.0
    %152 = vmatmul.mubr.f32.gmra.mxu0 %v43
    %v153 = vpop.f32.mrf.mxu0
    %v154 = vadd.f32 0.0, %v153
    %v155 = vpop.f32.mrf.mxu0
    %156 = vmatprep.mubr.f32.mxu0 0.0
    %157 = vmatmul.mubr.f32.gmra.mxu0 %v44
    %v158 = vpop.f32.mrf.mxu0
    %v159 = vadd.f32 0.0, %v158
    %v160 = vpop.f32.mrf.mxu0
    %161 = vmatprep.mubr.f32.mxu0 0.0
    %162 = vmatmul.mubr.f32.gmra.mxu0 %v45
    %v163 = vpop.f32.mrf.mxu0
    %v164 = vadd.f32 0.0, %v163
    %v165 = vpop.f32.mrf.mxu0
    %166 = vmatprep.mubr.f32.mxu0 0.0
    %167 = vmatmul.mubr.f32.gmra.mxu0 %v46
    %v168 = vpop.f32.mrf.mxu0
    %v169 = vadd.f32 0.0, %v168
    %v170 = vpop.f32.mrf.mxu0
    %171 = vmatprep.mubr.f32.mxu0 0.0
    %172 = vmatmul.mubr.f32.gmra.mxu0 %v47
    %v173 = vpop.f32.mrf.mxu0
    %v174 = vadd.f32 0.0, %v173
    %v175 = vpop.f32.mrf.mxu0
    %176 = vmatprep.mubr.f32.mxu0 0.0
    %177 = vmatmul.mubr.f32.gmra.mxu0 %v48
    %v178 = vpop.f32.mrf.mxu0
    %v179 = vadd.f32 0.0, %v178
    %v180 = vpop.f32.mrf.mxu0
    %181 = vmatprep.mubr.f32.mxu0 0.0
    %182 = vmatmul.mubr.f32.gmra.mxu0 %v49
    %v183 = vpop.f32.mrf.mxu0
    %v184 = vadd.f32 0.0, %v183
    %v185 = vpop.f32.mrf.mxu0
    %186 = vmatprep.mubr.f32.mxu0 0.0
    %187 = vmatmul.mubr.f32.gmra.mxu0 %v50
    %v188 = vpop.f32.mrf.mxu0
    %v189 = vadd.f32 0.0, %v188
    %v190 = vpop.f32.mrf.mxu0
    %191 = vmatprep.mubr.f32.mxu0 0.0
    %192 = vmatmul.mubr.f32.gmra.mxu0 %v51
    %v193 = vpop.f32.mrf.mxu0
    %v194 = vadd.f32 0.0, %v193
    %v195 = vpop.f32.mrf.mxu0
    %196 = vmatprep.mubr.f32.mxu0 0.0
    %197 = vmatmul.mubr.f32.gmra.mxu0 %v52
    %v198 = vpop.f32.mrf.mxu0
    %v199 = vadd.f32 0.0, %v198
    %v200 = vpop.f32.mrf.mxu0
    %201 = vmatprep.mubr.f32.mxu0 0.0
    %202 = vmatmul.mubr.f32.gmra.mxu0 %v53
    %v203 = vpop.f32.mrf.mxu0
    %v204 = vadd.f32 0.0, %v203
    %v205 = vpop.f32.mrf.mxu0
    %206 = vmatprep.mubr.f32.mxu0 0.0
    %207 = vmatmul.mubr.f32.gmra.mxu0 %v54
    %v208 = vpop.f32.mrf.mxu0
    %v209 = vadd.f32 0.0, %v208
    %v210 = vpop.f32.mrf.mxu0
    %211 = vmatprep.mubr.f32.mxu0 0.0
    %212 = vmatmul.mubr.f32.gmra.mxu0 %v55
    %v213 = vpop.f32.mrf.mxu0
    %v214 = vadd.f32 0.0, %v213
    %v215 = vpop.f32.mrf.mxu0
    %216 = vdwg.mxu0
    %217 = vst [vmem:[#allocation7] sm:$0xff] %v139
    %218 = vst [vmem:[#allocation7 + $0x8] sm:$0xff] %v144
    %219 = vst [vmem:[#allocation7 + $0x10] sm:$0xff] %v149
    %220 = vst [vmem:[#allocation7 + $0x18] sm:$0xff] %v154
    %221 = vst [vmem:[#allocation7 + $0x20] sm:$0xff] %v159
    %222 = vst [vmem:[#allocation7 + $0x28] sm:$0xff] %v164
    %223 = vst [vmem:[#allocation7 + $0x30] sm:$0xff] %v169
    %224 = vst [vmem:[#allocation7 + $0x38] sm:$0xff] %v174
    %225 = vst [vmem:[#allocation7 + $0x40] sm:$0xff] %v179
    %226 = vst [vmem:[#allocation7 + $0x48] sm:$0xff] %v184
    %227 = vst [vmem:[#allocation7 + $0x50] sm:$0xff] %v189
    %228 = vst [vmem:[#allocation7 + $0x58] sm:$0xff] %v194
    %229 = vst [vmem:[#allocation7 + $0x60] sm:$0xff] %v199
    %230 = vst [vmem:[#allocation7 + $0x68] sm:$0xff] %v204
    %231 = vst [vmem:[#allocation7 + $0x70] sm:$0xff] %v209
    %232 = vst [vmem:[#allocation7 + $0x78] sm:$0xff] %v214
    // Predicated region
    $region18: #{tpu_custom_call.1} parent=1 // pred_check
      _
    $region19: #{tpu_custom_call.1} parent=1 // pred_check_branch
      %234 = sbr.rel (0) target = $region21
    $region20: #{tpu_custom_call.1} parent=1 // pred_region
      %s236 = ssub.s32 2048, 2048
      %237 = vsyncadd [#allocation4], %s236
      %s238 = sshll.u32 [#allocation7], 4
      %s239 = int_to_ptr.vmem [resolvable:$true] %s238
      %244 = dma.vmem_to_hbm [thread:$0]  %s239, 2048, %s2, [#allocation4], 128, 128, 8
    $region21: #{tpu_custom_call.1} parent=1 // pred_fallthru
      _
    // Predicated region
    $region22: #{tpu_custom_call.1} parent=1 // pred_check
      _
    $region23: #{tpu_custom_call.1} parent=1 // pred_check_branch
      %246 = sbr.rel (0) target = $region25
    $region24: #{tpu_custom_call.1} parent=1 // pred_region
      %247 = dma.done [#allocation4], 2048
    $region25: #{tpu_custom_call.1} parent=1 // pred_fallthru
      _
    %248 = vsyncpa [#allocation3], 1
    %249 = vsyncpa [#allocation6], 1
    %250 = vsyncpa [#allocation4], 1

</llo_original>
